<compile_context>
chip_gen: v7x
topology: tpu7x:2x2x1
jax: 0.10.0
libtpu: 0.0.40
codegen_flags: <defaults>
</compile_context>

<pallas_src>
import functools

import jax
import jax.numpy as jnp
from jax.experimental import pallas as pl
from jax.experimental.pallas import tpu as pltpu


# ------------------------------ helpers --------------------------------------

def _round_up(x, m):
    return -(-x // m) * m


def _vmem_budget():
    """~75% of physical per-core VMEM (headroom for compiler scratch/sems)."""
    try:
        cap = int(pltpu.get_tpu_info().vmem_capacity_bytes)
    except Exception:
        cap = 64 << 20            # conservative fallback: v7x has 64 MiB / TC
    return int(cap) * 3 // 4


def _pick_tm(n, tm_default):
    tm = min(tm_default, n)
    # Keep >= 2 row tiles when N allows it, so the "parallel" grid axis has
    # work for both TensorCores (v7x megacore sharding).
    if n > 256 and tm >= n:
        tm = _round_up(-(-n // 2), 8)
    return tm


def _tk_candidates(n, max_tk):
    """K-tile candidates, largest first: either tk == n (single K block) or a
    multiple of 128 (ragged tail masked in-kernel)."""
    cands = []
    if n <= max_tk:
        cands.append(n)
    t = min((max_tk // 128) * 128, _round_up(n, 128))
    while t >= 128:
        if t < n:
            cands.append(t)
        t -= 128
    if not cands:
        cands.append(n)
    return cands


def _plan_tiles(n, gbytes, rhs_cols, rhs_itemsize, acc_cols, out_cols,
                out_itemsize, budget, tm_default, max_tk):
    """Pick (tm, tk, rhs_resident) so the double-buffered working set fits."""
    tm = _pick_tm(n, tm_default)
    fixed = (tm * acc_cols * 4                      # f32 accumulator scratch
             + 2 * tm * out_cols * out_itemsize     # output tiles
             + (1 << 20))                           # bias / weights / slack
    cands = _tk_candidates(n, max_tk)
    # Prefer a fully VMEM-resident RHS (removes the per-row-tile HBM
    # re-stream), then fall back to streaming (tk, rhs_cols) blocks.
    for resident in (True, False):
        for tk in cands:
            n_pad = _round_up(n, tk)
            rhs_rows = n_pad if resident else tk
            est = (fixed
                   + 2 * tm * tk * gbytes                    # graph tiles (x2)
                   + 2 * rhs_rows * rhs_cols * rhs_itemsize)  # RHS buffers
            if est <= budget:
                return tm, tk, resident
    return tm, cands[-1], False


# ------------------------------ kernels --------------------------------------

def _project_kernel(x_ref, wt_ref, xw_ref):
    # XW_tile = X_tile @ W^T  (f32 MXU; output narrowed to bf16 when requested)
    xw_ref[...] = jnp.dot(x_ref[...], wt_ref[...],
                          preferred_element_type=jnp.float32).astype(xw_ref.dtype)


def _masked_graph_tile(graph_ref, k, tk, n_nodes, mask_tail):
    g = graph_ref[...]
    if mask_tail:
        # Zero the ragged K tail: OOB block contents are unspecified, and the
        # zero-padded RHS rows would otherwise hit 0 * NaN.
        col = k * tk + jax.lax.broadcasted_iota(jnp.int32, g.shape, 1)
        g = jnp.where(col < n_nodes, g, jnp.zeros_like(g))
    return g


def _rhs_slice(rhs_ref, k, tk, rhs_resident):
    if rhs_resident:
        return rhs_ref[pl.ds(pl.multiple_of(k * tk, tk), tk), :]
    return rhs_ref[...]


def _agg_reassoc_kernel(graph_ref, xw_ref, b_ref, out_ref, *scratch, tk,
                        n_nodes, mask_tail, rhs_resident, activation):
    # out_tile = graph_tile @ XW + b   (K-tiled over the node dimension)
    acc_ref = scratch[0] if scratch else out_ref      # f32 out -> acc in place
    k = pl.program_id(1)

    @pl.when(k == 0)
    def _():
        acc_ref[...] = jnp.zeros_like(acc_ref)

    g = _masked_graph_tile(graph_ref, k, tk, n_nodes, mask_tail)
    xw = _rhs_slice(xw_ref, k, tk, rhs_resident)
    # Native bf16 x bf16 MXU path with f32 accumulation (no in-kernel upcast).
    acc_ref[...] += jnp.dot(g, xw, preferred_element_type=jnp.float32)

    @pl.when(k == pl.num_programs(1) - 1)
    def _():
        y = acc_ref[...] + b_ref[...]
        if activation is not None:
            y = activation(y)
        out_ref[...] = y.astype(out_ref.dtype)


def _agg_then_linear_kernel(graph_ref, x_ref, wt_ref, b_ref, out_ref, acc_ref, *,
                            tk, n_nodes, mask_tail, rhs_resident, activation):
    # H_tile += graph_tile @ X_tile; at the last K step: out = H @ W^T + b
    k = pl.program_id(1)

    @pl.when(k == 0)
    def _():
        acc_ref[...] = jnp.zeros_like(acc_ref)

    g = _masked_graph_tile(graph_ref, k, tk, n_nodes, mask_tail)
    x = _rhs_slice(x_ref, k, tk, rhs_resident)
    acc_ref[...] += jnp.dot(g, x, preferred_element_type=jnp.float32)

    @pl.when(k == pl.num_programs(1) - 1)
    def _():
        y = jnp.dot(acc_ref[...], wt_ref[...],
                    preferred_element_type=jnp.float32) + b_ref[...]
        if activation is not None:
            y = activation(y)
        out_ref[...] = y.astype(out_ref.dtype)


# ------------------------------ wrapper --------------------------------------

def graph_conv(graph, features, weight, bias, *, activation=None, norm=None,
               tm=512, max_tk=2048, graph_dtype=jnp.bfloat16):
    """Pallas GraphConv forward.

    graph:    [N, N]        dense adjacency
    features: [N, F_in]
    weight:   [F_out, F_in] (PyTorch nn.Linear convention)
    bias:     [F_out]
    returns   [N, F_out]

    graph_dtype=jnp.bfloat16 is exact for 0/1 adjacency and halves the
    dominant HBM stream; pass graph_dtype=None to keep the original dtype
    (exact for arbitrarily-weighted graphs).
    """
    N = graph.shape[0]
    f_in = features.shape[1]
    f_out = weight.shape[0]
    out_dtype = features.dtype

    # Activation: None, the string "relu", or any jnp-traceable callable.
    if activation == "relu":
        act_fn = lambda v: jnp.maximum(v, 0.0)
    else:
        act_fn = activation

    # NOTE: for a one-shot call this cast is its own N^2 HBM round trip; store
    # the adjacency in bf16 once and reuse it across GNN layers to amortize.
    if graph_dtype is not None and graph.dtype != graph_dtype:
        g = graph.astype(graph_dtype)
    else:
        g = graph
    # Aggregation RHS (XW / features) matches the graph dtype so the big
    # contraction runs on the native bf16 MXU path (f32 accumulation).
    rhs_dtype = jnp.bfloat16 if g.dtype == jnp.bfloat16 else jnp.float32
    # TODO(synk): int8 (v5e/v6e) / fp8 (v7x) adjacency streaming not implemented.

    gbytes = jnp.dtype(g.dtype).itemsize
    rhs_itemsize = jnp.dtype(rhs_dtype).itemsize
    out_itemsize = jnp.dtype(out_dtype).itemsize

    # Lane-dense output: pad the linear output dim to a multiple of 128
    # (zero columns of W / zero bias entries -> exact), slice after the call.
    f_out_pad = _round_up(f_out, 128)
    wt = jnp.zeros((f_in, f_out_pad), jnp.float32)
    wt = wt.at[:, :f_out].set(weight.astype(jnp.float32).T)     # pre-transposed
    b2 = jnp.zeros((1, f_out_pad), jnp.float32)
    b2 = b2.at[:, :f_out].set(bias.astype(jnp.float32))

    budget = _vmem_budget()
    reassociate = f_out <= f_in
    acc_in_out = reassociate and (out_dtype == jnp.float32)

    if reassociate:
        rhs_cols = f_out_pad
        acc_cols = 0 if acc_in_out else f_out_pad
    else:
        rhs_cols = f_in
        acc_cols = f_in

    tm_, tk, rhs_resident = _plan_tiles(
        N, gbytes, rhs_cols, rhs_itemsize, acc_cols, f_out_pad, out_itemsize,
        budget, tm, max_tk)
    num_k = pl.cdiv(N, tk)
    n_pad = num_k * tk
    mask_tail = (N % tk) != 0
    grid = (pl.cdiv(N, tm_), num_k)

    # Zero-pad the node axis of the (small) RHS so streamed / sliced K blocks
    # never touch unspecified memory; zero rows contribute exactly 0.
    feats = features
    if n_pad != N:
        feats = jnp.zeros((n_pad, f_in), features.dtype).at[:N].set(features)

    compiler_params = pltpu.CompilerParams(
        dimension_semantics=("parallel", "arbitrary"),
        vmem_limit_bytes=budget)

    if reassociate:
        # ---- Path A: re-associated  out = graph @ (X @ W^T) + b ----
        tmp = min(256, n_pad)
        xw = pl.pallas_call(
            _project_kernel,
            out_shape=jax.ShapeDtypeStruct((n_pad, f_out_pad), rhs_dtype),
            grid_spec=pltpu.PrefetchScalarGridSpec(
                num_scalar_prefetch=0,
                grid=(pl.cdiv(n_pad, tmp),),
                in_specs=[
                    pl.BlockSpec((tmp, f_in), lambda i: (i, 0)),
                    pl.BlockSpec((f_in, f_out_pad), lambda i: (0, 0)),
                ],
                out_specs=pl.BlockSpec((tmp, f_out_pad), lambda i: (i, 0)),
            ),
            compiler_params=pltpu.CompilerParams(
                dimension_semantics=("parallel",),
                vmem_limit_bytes=budget),
        )(feats, wt)

        if rhs_resident:
            xw_spec = pl.BlockSpec((n_pad, f_out_pad), lambda i, k: (0, 0))
        else:
            xw_spec = pl.BlockSpec((tk, f_out_pad), lambda i, k: (k, 0))
        scratch = [] if acc_in_out else [pltpu.VMEM((tm_, f_out_pad), jnp.float32)]

        out_pad = pl.pallas_call(
            functools.partial(_agg_reassoc_kernel, tk=tk, n_nodes=N,
                              mask_tail=mask_tail, rhs_resident=rhs_resident,
                              activation=act_fn),
            out_shape=jax.ShapeDtypeStruct((N, f_out_pad), out_dtype),
            grid_spec=pltpu.PrefetchScalarGridSpec(
                num_scalar_prefetch=0,
                grid=grid,
                in_specs=[
                    pl.BlockSpec((tm_, tk), lambda i, k: (i, k)),          # graph
                    xw_spec,                                               # XW
                    pl.BlockSpec((1, f_out_pad), lambda i, k: (0, 0)),     # bias
                ],
                out_specs=pl.BlockSpec((tm_, f_out_pad), lambda i, k: (i, 0)),
                scratch_shapes=scratch,
            ),
            compiler_params=compiler_params,
        )(g, xw, b2)
    else:
        # ---- Path B (f_in < f_out): aggregate, then linear, in one kernel ----
        x_in = feats.astype(rhs_dtype)
        if rhs_resident:
            x_spec = pl.BlockSpec((n_pad, f_in), lambda i, k: (0, 0))
        else:
            x_spec = pl.BlockSpec((tk, f_in), lambda i, k: (k, 0))

        out_pad = pl.pallas_call(
            functools.partial(_agg_then_linear_kernel, tk=tk, n_nodes=N,
                              mask_tail=mask_tail, rhs_resident=rhs_resident,
                              activation=act_fn),
            out_shape=jax.ShapeDtypeStruct((N, f_out_pad), out_dtype),
            grid_spec=pltpu.PrefetchScalarGridSpec(
                num_scalar_prefetch=0,
                grid=grid,
                in_specs=[
                    pl.BlockSpec((tm_, tk), lambda i, k: (i, k)),          # graph
                    x_spec,                                                # features
                    pl.BlockSpec((f_in, f_out_pad), lambda i, k: (0, 0)),  # W^T (padded)
                    pl.BlockSpec((1, f_out_pad), lambda i, k: (0, 0)),     # bias
                ],
                out_specs=pl.BlockSpec((tm_, f_out_pad), lambda i, k: (i, 0)),
                scratch_shapes=[pltpu.VMEM((tm_, f_in), jnp.float32)],
            ),
            compiler_params=compiler_params,
        )(g, x_in, wt, b2)

    out = out_pad[:, :f_out]
    if norm is not None:
        # TODO(synk): norm (arbitrary callable, e.g. LayerNorm) applied outside
        # the kernel, not fused.
        out = norm(out)
    return out


def reference(graph, features, weight, bias):
    h = graph @ features
    return h @ weight.T + bias


if __name__ == "__main__":
    key = jax.random.PRNGKey(0)
    key_a, key_b = jax.random.split(key)

    def make_inputs(k, n, f_in, f_out):
        k_g, k_x, k_w, k_b = jax.random.split(k, 4)
        graph = (jax.random.uniform(k_g, (n, n), jnp.float32) < 0.2).astype(jnp.float32)
        features = jax.random.normal(k_x, (n, f_in), jnp.float32)
        bound = 1.0 / (f_in ** 0.5)  # nn.Linear default init range
        weight = jax.random.uniform(k_w, (f_out, f_in), jnp.float32, -bound, bound)
        bias = jax.random.uniform(k_b, (f_out,), jnp.float32, -bound, bound)
        return graph, features, weight, bias

    # Path A: f_out <= f_in -> re-associated graph @ (X @ W.T), bf16 streaming.
    g, x, w, b = make_inputs(key_a, 64, 32, 16)
    out = jax.block_until_ready(graph_conv(g, x, w, b))
    ref = reference(g, x, w, b)
    assert out.shape == ref.shape
    # bf16 adjacency is exact (0/1) but XW is bf16-rounded -> looser tolerance.
    assert jnp.allclose(out, ref, atol=5e-2, rtol=5e-2), "path A (bf16) mismatch"

    # Exact f32 path (graph_dtype=None keeps every operand in f32).
    out_f32 = jax.block_until_ready(graph_conv(g, x, w, b, graph_dtype=None))
    assert jnp.allclose(out_f32, ref, atol=1e-4, rtol=1e-4), "path A (f32) mismatch"

    # Path B: f_in < f_out -> aggregate-then-linear kernel, bf16 streaming.
    g2, x2, w2, b2 = make_inputs(key_b, 64, 16, 48)
    out2 = jax.block_until_ready(graph_conv(g2, x2, w2, b2))
    ref2 = reference(g2, x2, w2, b2)
    assert out2.shape == ref2.shape
    assert jnp.allclose(out2, ref2, atol=5e-2, rtol=5e-2), "path B (bf16) mismatch"

    print("KERNEL_OK")
</pallas_src>

<mosaic_0001>
module attributes {stable_mosaic.version = 11 : i64} {
  func.func @_project_kernel(%arg0: i32, %arg1: memref<64x32xf32, #tpu.memory_space<vmem>>, %arg2: memref<32x128xf32, #tpu.memory_space<vmem>>, %arg3: memref<64x128xbf16, #tpu.memory_space<vmem>>) attributes {dimension_semantics = [#tpu.dimension_semantics<parallel>], iteration_bounds = array<i64: 1>, scalar_prefetch = 0 : i64, scratch_operands = 0 : i64, tpu.core_type = #tpu.core_type<tc>, window_params = [{transform_indices = @transform_0, window_bounds = array<i64: 64, 32>}, {pipeline_mode = #tpu.pipeline_mode<synchronous>, transform_indices = @transform_1, window_bounds = array<i64: 32, 128>}, {transform_indices = @transform_2, window_bounds = array<i64: 64, 128>}]} {
    %c0 = arith.constant 0 : index
    %c0_0 = arith.constant 0 : index
    %0 = vector.load %arg1[%c0, %c0_0] : memref<64x32xf32, #tpu.memory_space<vmem>>, vector<64x32xf32>
    %c0_1 = arith.constant 0 : index
    %c0_2 = arith.constant 0 : index
    %1 = vector.load %arg2[%c0_1, %c0_2] : memref<32x128xf32, #tpu.memory_space<vmem>>, vector<32x128xf32>
    %cst = arith.constant dense<0.000000e+00> : vector<64x128xf32>
    %2 = tpu.matmul %0, %1, %cst {dimension_numbers = #tpu.dot_dimension_numbers<[1], [0], [0], [1], [0, 0, 1, 1], [], []>} : vector<64x32xf32>, vector<32x128xf32>, vector<64x128xf32> -> vector<64x128xf32>
    %3 = arith.truncf %2 : vector<64x128xf32> to vector<64x128xbf16>
    %c0_3 = arith.constant 0 : index
    %c0_4 = arith.constant 0 : index
    %4 = vector.load %arg3[%c0_3, %c0_4] : memref<64x128xbf16, #tpu.memory_space<vmem>>, vector<64x128xbf16>
    tpu.vector_store %arg3[%c0_3, %c0_4], %3 {strides = array<i32>} : memref<64x128xbf16, #tpu.memory_space<vmem>>, vector<64x128xbf16>,
    return
  }
  func.func @transform_0(%arg0: i32) -> (i32, i32) {
    %c0_i32 = arith.constant 0 : i32
    %c0_i32_0 = arith.constant 0 : i32
    return %arg0, %c0_i32 : i32, i32
  }
  func.func @transform_1(%arg0: i32) -> (i32, i32) {
    %c0_i32 = arith.constant 0 : i32
    %c0_i32_0 = arith.constant 0 : i32
    %c0_i32_1 = arith.constant 0 : i32
    return %c0_i32, %c0_i32_0 : i32, i32
  }
  func.func @transform_2(%arg0: i32) -> (i32, i32) {
    %c0_i32 = arith.constant 0 : i32
    %c0_i32_0 = arith.constant 0 : i32
    return %arg0, %c0_i32 : i32, i32
  }
}

</mosaic_0001>

<llo_original>
// kernel: tpu_custom_call.1
$region0: #{tpu_custom_call.1}
  #allocation0 [shape = 'u32[]', space=smem, size = 0x4, offset = 0x4, fixed_abs, tag = 'smem constant byte address 0x4 - core index']
  #allocation1 [shape = 'u32[144,128]{1,0:T(1,128)}', space=vmem, size = 0x12000, scoped, tag = 'internal scratch']
  %s0 = inlined_call_operand.vmem [shape: f32[64,32], index: 0, kind: input, shape index: {}]
  %s1 = inlined_call_operand.vmem [shape: f32[32,128], index: 1, kind: input, shape index: {}]
  %s2 = inlined_call_operand.hbm [shape: bf16[64,128], index: 2, kind: output, shape index: {}]
  %s3 = sld [smem:[#allocation0]]
  $region18: #{tpu_custom_call.1} parent=0
    _
  %s5 = ssub.s32 1, %s3
  %s6 = scalar_select 0, %s5, %s3
  $region1: #{tpu_custom_call.1} parent=0
    #allocation2 [shape = 'u8[16384]{0}', space=vmem, size = 0x4000, scoped, tag = 'output window, operand 0, single buffered']
    #allocation3 [shape = 's32[1]{0}', space=sflag, size = 0x4, scoped, tag = 'scoped memory for tpu_custom_call.1']
    %7 = vsyncpa [#allocation3], 0
    // Predicated region
    $region2: #{tpu_custom_call.1} parent=1 // pred_check
      _
    $region3: #{tpu_custom_call.1} parent=1 // pred_check_branch
      %9 = sbr.rel (0) target = $region5
    $region4: #{tpu_custom_call.1} parent=1 // pred_region
      _
    $region5: #{tpu_custom_call.1} parent=1 // pred_fallthru
      _
    // Predicated region
    $region6: #{tpu_custom_call.1} parent=1 // pred_check
      _
    $region7: #{tpu_custom_call.1} parent=1 // pred_check_branch
      %11 = sbr.rel (0) target = $region9
    $region8: #{tpu_custom_call.1} parent=1 // pred_region
      _
    $region9: #{tpu_custom_call.1} parent=1 // pred_fallthru
      _
    %v12 = vld [vmem:[%s0] sm:$0xff]
    %v13 = vld [vmem:[%s0 + $0x8] sm:$0xff]
    %v14 = vld [vmem:[%s0 + $0x10] sm:$0xff]
    %v15 = vld [vmem:[%s0 + $0x18] sm:$0xff]
    %v16 = vld [vmem:[%s0 + $0x20] sm:$0xff]
    %v17 = vld [vmem:[%s0 + $0x28] sm:$0xff]
    %v18 = vld [vmem:[%s0 + $0x30] sm:$0xff]
    %v19 = vld [vmem:[%s0 + $0x38] sm:$0xff]
    %v20 = vld [vmem:[%s1] sm:$0xff]
    %v21 = vld [vmem:[%s1 + $0x8] sm:$0xff]
    %v22 = vld [vmem:[%s1 + $0x10] sm:$0xff]
    %v23 = vld [vmem:[%s1 + $0x18] sm:$0xff]
    %vm24 = vcmask 261120
    %v26 = vsel %vm24, %v12, 0
    %v29 = vsel %vm24, %v13, 0
    %v32 = vsel %vm24, %v14, 0
    %v35 = vsel %vm24, %v15, 0
    %v38 = vsel %vm24, %v16, 0
    %v41 = vsel %vm24, %v17, 0
    %v44 = vsel %vm24, %v18, 0
    %v47 = vsel %vm24, %v19, 0
    %49 = vmatprep.subr.mxu0 0.0
    %50 = vmatpush1.msra.mxu0 %v20
    %51 = vmatprep.subr.mxu0 0.0
    %52 = vmatpush1.msra.mxu0 %v21
    %53 = vmatprep.subr.mxu0 0.0
    %54 = vmatpush1.msra.mxu0 %v22
    %55 = vmatprep.subr.mxu0 0.0
    %56 = vmatpush1.msra.mxu0 %v23
    %57 = vmatprep.subr.mxu0 0.0
    %58 = vmatpush1.msra.mxu0 0.0
    %59 = vmatprep.subr.mxu0 0.0
    %60 = vmatpush1.msra.mxu0 0.0
    %61 = vmatprep.subr.mxu0 0.0
    %62 = vmatpush1.msra.mxu0 0.0
    %63 = vmatprep.subr.mxu0 0.0
    %64 = vmatpush1.msra.mxu0 0.0
    %65 = vmatprep.subr.mxu0 0.0
    %66 = vmatpush1.msra.mxu0 0.0
    %67 = vmatprep.subr.mxu0 0.0
    %68 = vmatpush1.msra.mxu0 0.0
    %69 = vmatprep.subr.mxu0 0.0
    %70 = vmatpush1.msra.mxu0 0.0
    %71 = vmatprep.subr.mxu0 0.0
    %72 = vmatpush1.msra.mxu0 0.0
    %73 = vmatprep.subr.mxu0 0.0
    %74 = vmatpush1.msra.mxu0 0.0
    %75 = vmatprep.subr.mxu0 0.0
    %76 = vmatpush1.msra.mxu0 0.0
    %77 = vmatprep.subr.mxu0 0.0
    %78 = vmatpush1.msra.mxu0 0.0
    %79 = vmatprep.subr.mxu0 0.0
    %80 = vmatpush1.msra.mxu0 0.0
    %81 = vmatprep.subr.mxu0 0.0
    %82 = vmatpush1.msra.mxu0 0.0
    %83 = vmatprep.subr.mxu0 0.0
    %84 = vmatpush1.msra.mxu0 0.0
    %85 = vmatprep.subr.mxu0 0.0
    %86 = vmatpush1.msra.mxu0 0.0
    %87 = vmatprep.subr.mxu0 0.0
    %88 = vmatpush1.msra.mxu0 0.0
    %89 = vmatprep.subr.mxu0 0.0
    %90 = vmatpush1.msra.mxu0 0.0
    %91 = vmatprep.subr.mxu0 0.0
    %92 = vmatpush1.msra.mxu0 0.0
    %93 = vmatprep.subr.mxu0 0.0
    %94 = vmatpush1.msra.mxu0 0.0
    %95 = vmatprep.subr.mxu0 0.0
    %96 = vmatpush1.msra.mxu0 0.0
    %97 = vmatprep.subr.mxu0 0.0
    %98 = vmatpush1.msra.mxu0 0.0
    %99 = vmatprep.subr.mxu0 0.0
    %100 = vmatpush1.msra.mxu0 0.0
    %101 = vmatprep.subr.mxu0 0.0
    %102 = vmatpush1.msra.mxu0 0.0
    %103 = vmatprep.subr.mxu0 0.0
    %104 = vmatpush1.msra.mxu0 0.0
    %105 = vmatprep.subr.mxu0 0.0
    %106 = vmatpush1.msra.mxu0 0.0
    %107 = vmatprep.subr.mxu0 0.0
    %108 = vmatpush1.msra.mxu0 0.0
    %109 = vmatprep.subr.mxu0 0.0
    %110 = vmatpush1.msra.mxu0 0.0
    %111 = vmatprep.subr.mxu0 0.0
    %112 = vmatpush1.msra.mxu0 0.0
    %113 = vmatprep.mubr.f32.mxu0 0.0
    %114 = vmatmul.mubr.f32.gmra.mrb[0].mxu0 %v26
    %v115 = vpop.f32.mrb[0].mxu0
    %v116 = vadd.f32 0.0, %v115
    %v117 = vpop.f32.mrb[0].mxu0
    %118 = vmatprep.mubr.f32.mxu0 0.0
    %119 = vmatmul.mubr.f32.gmra.mrb[0].mxu0 %v29
    %v120 = vpop.f32.mrb[0].mxu0
    %v121 = vadd.f32 0.0, %v120
    %v122 = vpop.f32.mrb[0].mxu0
    %123 = vmatprep.mubr.f32.mxu0 0.0
    %124 = vmatmul.mubr.f32.gmra.mrb[0].mxu0 %v32
    %v125 = vpop.f32.mrb[0].mxu0
    %v126 = vadd.f32 0.0, %v125
    %v127 = vpop.f32.mrb[0].mxu0
    %128 = vmatprep.mubr.f32.mxu0 0.0
    %129 = vmatmul.mubr.f32.gmra.mrb[0].mxu0 %v35
    %v130 = vpop.f32.mrb[0].mxu0
    %v131 = vadd.f32 0.0, %v130
    %v132 = vpop.f32.mrb[0].mxu0
    %133 = vmatprep.mubr.f32.mxu0 0.0
    %134 = vmatmul.mubr.f32.gmra.mrb[0].mxu0 %v38
    %v135 = vpop.f32.mrb[0].mxu0
    %v136 = vadd.f32 0.0, %v135
    %v137 = vpop.f32.mrb[0].mxu0
    %138 = vmatprep.mubr.f32.mxu0 0.0
    %139 = vmatmul.mubr.f32.gmra.mrb[0].mxu0 %v41
    %v140 = vpop.f32.mrb[0].mxu0
    %v141 = vadd.f32 0.0, %v140
    %v142 = vpop.f32.mrb[0].mxu0
    %143 = vmatprep.mubr.f32.mxu0 0.0
    %144 = vmatmul.mubr.f32.gmra.mrb[0].mxu0 %v44
    %v145 = vpop.f32.mrb[0].mxu0
    %v146 = vadd.f32 0.0, %v145
    %v147 = vpop.f32.mrb[0].mxu0
    %148 = vmatprep.mubr.f32.mxu0 0.0
    %149 = vmatmul.mubr.f32.gmra.mrb[0].mxu0 %v47
    %v150 = vpop.f32.mrb[0].mxu0
    %v151 = vadd.f32 0.0, %v150
    %v152 = vpop.f32.mrb[0].mxu0
    %153 = vdwg.mxu0
    %v154 = vpack.c.bf16 %v121, %v116
    %v155 = vpack.c.bf16 %v131, %v126
    %v156 = vpack.c.bf16 %v141, %v136
    %v157 = vpack.c.bf16 %v151, %v146
    %v162 = vunpack.c.l.b16 %v154
    %v163 = vunpack.c.h.b16 %v154
    %v164 = vunpack.c.l.b16 %v155
    %v165 = vunpack.c.h.b16 %v155
    %v166 = vunpack.c.l.b16 %v156
    %v167 = vunpack.c.h.b16 %v156
    %v168 = vunpack.c.l.b16 %v157
    %v169 = vunpack.c.h.b16 %v157
    %v170 = vpack.c.b16 %v162, %v162
    %v171 = vpack.c.b16 %v163, %v163
    %v172 = vpack.c.b16 %v164, %v164
    %v173 = vpack.c.b16 %v165, %v165
    %v174 = vpack.c.b16 %v166, %v166
    %v175 = vpack.c.b16 %v167, %v167
    %v176 = vpack.c.b16 %v168, %v168
    %v177 = vpack.c.b16 %v169, %v169
    %186 = vst [vmem:[#allocation2] sm:$0xf] %v170
    %187 = vst [vmem:[#allocation2 + $0x4] sm:$0xf] %v171
    %188 = vst [vmem:[#allocation2 + $0x8] sm:$0xf] %v172
    %189 = vst [vmem:[#allocation2 + $0xc] sm:$0xf] %v173
    %190 = vst [vmem:[#allocation2 + $0x10] sm:$0xf] %v174
    %191 = vst [vmem:[#allocation2 + $0x14] sm:$0xf] %v175
    %192 = vst [vmem:[#allocation2 + $0x18] sm:$0xf] %v176
    %193 = vst [vmem:[#allocation2 + $0x1c] sm:$0xf] %v177
    // Predicated region
    $region10: #{tpu_custom_call.1} parent=1 // pred_check
      _
    $region11: #{tpu_custom_call.1} parent=1 // pred_check_branch
      %195 = sbr.rel (0) target = $region13
    $region12: #{tpu_custom_call.1} parent=1 // pred_region
      %s197 = ssub.s32 512, 512
      %198 = vsyncadd [#allocation3], %s197
      %s199 = sshll.u32 [#allocation2], 4
      %s200 = int_to_ptr.vmem [resolvable:$true] %s199
      %205 = dma.vmem_to_hbm [thread:$0]  %s200, 512, %s2, [#allocation3], 64, 64, 4
    $region13: #{tpu_custom_call.1} parent=1 // pred_fallthru
      _
    // Predicated region
    $region14: #{tpu_custom_call.1} parent=1 // pred_check
      _
    $region15: #{tpu_custom_call.1} parent=1 // pred_check_branch
      %207 = sbr.rel (0) target = $region17
    $region16: #{tpu_custom_call.1} parent=1 // pred_region
      %208 = dma.done [#allocation3], 512
    $region17: #{tpu_custom_call.1} parent=1 // pred_fallthru
      _
    %209 = vsyncpa [#allocation3], 1

</llo_original>
